<compile_context>
chip_gen: v5e
topology: v5e:2x2
jax: 0.10.0
libtpu: 0.0.40
codegen_flags: <defaults>
</compile_context>

<pallas_src>
import functools

import jax
import jax.numpy as jnp
from jax.experimental import pallas as pl
from jax.experimental.pallas import tpu as pltpu

IN_DIM = 784
HID = 256
OUT_DIM = 1
MAX_TILE_B = 1024  # per-tile working set ~4 MiB (bf16 x, f32 activations)


def _round_up(x, m):
    return (x + m - 1) // m * m


def _cdiv(a, b):
    return (a + b - 1) // b


def _pick_tile_b(batch):
    """Batch tile selection.

    - batch <= 128: one tile whose blocks equal the full array extents (no
      (8,128) divisibility issue, no wasted work).
    - batch  > 128: at least 2 grid steps (so v7x megacore can shard the
      "parallel" axis), tiles multiples of 128 (lane-dense output blocks),
      capped at MAX_TILE_B.
    """
    if batch <= 128:
        return batch
    n_tiles = max(2, _cdiv(batch, MAX_TILE_B))
    return min(MAX_TILE_B, _round_up(_cdiv(batch, n_tiles), 128))


def _normalize_tile(batch, tile_b):
    if tile_b is None:
        return _pick_tile_b(batch)
    if tile_b >= batch:
        return batch  # single tile; blocks == full array extents
    return min(MAX_TILE_B, _round_up(tile_b, 128))


def _disc_kernel(x_ref, w1_ref, b1_ref, w2_ref, b2_ref, w3_ref, b3_ref, o_ref):
    # Whole MLP for one batch tile: two big bf16 MXU matmuls (f32 accumulation)
    # with f32 VPU LeakyReLU/bias, then the 256->1 head as an NT dot giving a
    # lane-dense (1, TILE_B) logit row, finished with a numerically stable
    # sigmoid (EUP exp).
    x = x_ref[...]                                                    # (TB, 784) bf16

    h1 = jnp.dot(x, w1_ref[...], preferred_element_type=jnp.float32) + b1_ref[...]
    h1 = jnp.where(h1 > 0, h1, 0.2 * h1)                              # LeakyReLU, f32

    h2 = jnp.dot(h1.astype(jnp.bfloat16), w2_ref[...],
                 preferred_element_type=jnp.float32) + b2_ref[...]
    h2 = jnp.where(h2 > 0, h2, 0.2 * h2)                              # LeakyReLU, f32

    # (1, 256) x (TB, 256)^T -> (1, TB): lane-dense head, negligible FLOPs.
    logits = jax.lax.dot_general(
        w3_ref[...], h2.astype(jnp.bfloat16), (((1,), (1,)), ((), ())),
        preferred_element_type=jnp.float32) + b3_ref[...]             # (1, TB) f32

    # Stable sigmoid: exp argument is always <= 0, so no inf intermediates.
    z = jnp.exp(-jnp.abs(logits))
    inv = 1.0 / (1.0 + z)
    o_ref[...] = jnp.where(logits >= 0, inv, z * inv)


@functools.partial(jax.jit, static_argnames=("tile_b",))
def discriminator_forward(x, w1, b1, w2, b2, w3, b3, *, tile_b=None):
    """x: (B, 784) -> (B, 1) f32 sigmoid scores."""
    B = x.shape[0]
    tb = _normalize_tile(B, tile_b)
    n_tiles = _cdiv(B, tb)  # ragged last block handled by Pallas (no jnp.pad)

    # MXU operands in bf16 (halves x HBM traffic too); biases stay f32.
    x_b = x.astype(jnp.bfloat16)
    w1_b = w1.astype(jnp.bfloat16)
    w2_b = w2.astype(jnp.bfloat16)
    w3_b = w3.astype(jnp.bfloat16)

    flops = 2 * B * (IN_DIM * HID + HID * HID + HID)
    bytes_accessed = (B * IN_DIM * 2                       # x (bf16)
                      + (IN_DIM * HID + HID * HID + HID) * 2  # weights (bf16)
                      + (HID + HID + OUT_DIM) * 4             # biases (f32)
                      + B * 4)                                 # output (f32)

    out_row = pl.pallas_call(
        _disc_kernel,
        out_shape=jax.ShapeDtypeStruct((1, B), jnp.float32),
        grid_spec=pltpu.PrefetchScalarGridSpec(
            num_scalar_prefetch=0,
            grid=(n_tiles,),
            in_specs=[
                pl.BlockSpec((tb, IN_DIM), lambda i: (i, 0)),    # x tile (bf16)
                pl.BlockSpec((IN_DIM, HID), lambda i: (0, 0)),   # w1 (resident)
                pl.BlockSpec((1, HID), lambda i: (0, 0)),        # b1
                pl.BlockSpec((HID, HID), lambda i: (0, 0)),      # w2
                pl.BlockSpec((1, HID), lambda i: (0, 0)),        # b2
                pl.BlockSpec((OUT_DIM, HID), lambda i: (0, 0)),  # w3 row (1, 256)
                pl.BlockSpec((1, OUT_DIM), lambda i: (0, 0)),    # b3 (1, 1)
            ],
            out_specs=pl.BlockSpec((1, tb), lambda i: (0, i)),   # lane-dense slab
        ),
        compiler_params=pltpu.CompilerParams(
            dimension_semantics=("parallel",),
            vmem_limit_bytes=32 * 1024 * 1024,
        ),
        cost_estimate=pl.CostEstimate(
            flops=flops, transcendentals=B, bytes_accessed=bytes_accessed),
    )(x_b, w1_b, b1, w2_b, b2, w3_b, b3)

    # Layout plumbing back to the PyTorch-shaped (B, 1) output.
    return out_row[0, :B][:, None]


def init_params(key):
    """Deterministic init mimicking nn.Linear default (uniform +/- 1/sqrt(fan_in))."""
    def linear(k, fan_in, fan_out, transpose_w=False):
        kw, kb = jax.random.split(k)
        bound = 1.0 / jnp.sqrt(fan_in)
        if transpose_w:   # row layout (out, in) — used for the final head
            w = jax.random.uniform(kw, (fan_out, fan_in), jnp.float32, -bound, bound)
        else:             # (in, out) layout — y = x @ W
            w = jax.random.uniform(kw, (fan_in, fan_out), jnp.float32, -bound, bound)
        b = jax.random.uniform(kb, (1, fan_out), jnp.float32, -bound, bound)
        return w, b

    k1, k2, k3 = jax.random.split(key, 3)
    w1, b1 = linear(k1, IN_DIM, HID)
    w2, b2 = linear(k2, HID, HID)
    w3, b3 = linear(k3, HID, OUT_DIM, transpose_w=True)   # w3: (1, 256), b3: (1, 1)
    return w1, b1, w2, b2, w3, b3


def reference_forward(x, w1, b1, w2, b2, w3, b3, mxu_dtype=jnp.float32):
    def mm(a, b):
        return jnp.dot(a.astype(mxu_dtype), b.astype(mxu_dtype),
                       preferred_element_type=jnp.float32)
    h1 = mm(x, w1) + b1
    h1 = jnp.where(h1 > 0, h1, 0.2 * h1)
    h2 = mm(h1, w2) + b2
    h2 = jnp.where(h2 > 0, h2, 0.2 * h2)
    logits = mm(h2, w3.T) + b3                   # (B, 1)
    return jax.nn.sigmoid(logits)


if __name__ == "__main__":
    key = jax.random.PRNGKey(0)
    kx, kx2, kp = jax.random.split(key, 3)
    params = init_params(kp)

    # Small-shape check (single tile, blocks == full extents).
    B = 8
    x = jax.random.normal(kx, (B, IN_DIM), jnp.float32)
    out = jax.block_until_ready(discriminator_forward(x, *params))
    ref_bf16 = reference_forward(x, *params, mxu_dtype=jnp.bfloat16)
    ref_f32 = reference_forward(x, *params)
    assert out.shape == (B, OUT_DIM)
    assert jnp.allclose(out, ref_bf16, atol=2e-3), "mismatch vs bf16 reference (B=8)"
    assert jnp.allclose(out, ref_f32, atol=5e-2), "mismatch vs f32 reference (B=8)"

    # Multi-tile path with a ragged last block (no wrapper padding), forced to a
    # small tile so the lane-dense multi-block output is exercised cheaply.
    B2 = 200
    x2 = jax.random.normal(kx2, (B2, IN_DIM), jnp.float32)
    out2 = jax.block_until_ready(discriminator_forward(x2, *params, tile_b=128))
    ref2_bf16 = reference_forward(x2, *params, mxu_dtype=jnp.bfloat16)
    ref2_f32 = reference_forward(x2, *params)
    assert out2.shape == (B2, OUT_DIM)
    assert jnp.allclose(out2, ref2_bf16, atol=2e-3), "mismatch vs bf16 reference (B=200)"
    assert jnp.allclose(out2, ref2_f32, atol=5e-2), "mismatch vs f32 reference (B=200)"

    print("KERNEL_OK")
</pallas_src>

<mosaic_0001>
module attributes {stable_mosaic.version = 11 : i64} {
  func.func @_disc_kernel(%arg0: i32, %arg1: memref<8x784xbf16, #tpu.memory_space<vmem>>, %arg2: memref<784x256xbf16, #tpu.memory_space<vmem>>, %arg3: memref<1x256xf32, #tpu.memory_space<vmem>>, %arg4: memref<256x256xbf16, #tpu.memory_space<vmem>>, %arg5: memref<1x256xf32, #tpu.memory_space<vmem>>, %arg6: memref<1x256xbf16, #tpu.memory_space<vmem>>, %arg7: memref<1x1xf32, #tpu.memory_space<vmem>>, %arg8: memref<1x8xf32, #tpu.memory_space<vmem>>) attributes {dimension_semantics = [#tpu.dimension_semantics<parallel>], iteration_bounds = array<i64: 1>, scalar_prefetch = 0 : i64, scratch_operands = 0 : i64, tpu.core_type = #tpu.core_type<tc>, window_params = [{transform_indices = @transform_0, window_bounds = array<i64: 8, 784>}, {pipeline_mode = #tpu.pipeline_mode<synchronous>, transform_indices = @transform_1, window_bounds = array<i64: 784, 256>}, {pipeline_mode = #tpu.pipeline_mode<synchronous>, transform_indices = @transform_2, window_bounds = array<i64: 1, 256>}, {pipeline_mode = #tpu.pipeline_mode<synchronous>, transform_indices = @transform_3, window_bounds = array<i64: 256, 256>}, {pipeline_mode = #tpu.pipeline_mode<synchronous>, transform_indices = @transform_4, window_bounds = array<i64: 1, 256>}, {pipeline_mode = #tpu.pipeline_mode<synchronous>, transform_indices = @transform_5, window_bounds = array<i64: 1, 256>}, {pipeline_mode = #tpu.pipeline_mode<synchronous>, transform_indices = @transform_6, window_bounds = array<i64: 1, 1>}, {transform_indices = @transform_7, window_bounds = array<i64: 1, 8>}]} {
    %c0 = arith.constant 0 : index
    %c0_0 = arith.constant 0 : index
    %0 = vector.load %arg1[%c0, %c0_0] : memref<8x784xbf16, #tpu.memory_space<vmem>>, vector<8x784xbf16>
    %c0_1 = arith.constant 0 : index
    %c0_2 = arith.constant 0 : index
    %1 = vector.load %arg2[%c0_1, %c0_2] : memref<784x256xbf16, #tpu.memory_space<vmem>>, vector<784x256xbf16>
    %cst = arith.constant dense<0.000000e+00> : vector<8x256xf32>
    %2 = tpu.matmul %0, %1, %cst {dimension_numbers = #tpu.dot_dimension_numbers<[1], [0], [0], [1], [0, 0, 1, 1], [], []>} : vector<8x784xbf16>, vector<784x256xbf16>, vector<8x256xf32> -> vector<8x256xf32>
    %c0_3 = arith.constant 0 : index
    %c0_4 = arith.constant 0 : index
    %3 = vector.load %arg3[%c0_3, %c0_4] : memref<1x256xf32, #tpu.memory_space<vmem>>, vector<1x256xf32>
    %4 = vector.broadcast %3 : vector<1x256xf32> to vector<8x256xf32>
    %5 = arith.addf %2, %4 : vector<8x256xf32>
    %cst_5 = arith.constant 0.000000e+00 : f32
    %6 = vector.broadcast %cst_5 : f32 to vector<8x256xf32>
    %7 = arith.cmpf ogt, %5, %6 : vector<8x256xf32>
    %cst_6 = arith.constant 2.000000e-01 : f32
    %8 = vector.broadcast %cst_6 : f32 to vector<8x256xf32>
    %9 = arith.mulf %8, %5 : vector<8x256xf32>
    %10 = arith.select %7, %5, %9 : vector<8x256xi1>, vector<8x256xf32>
    %11 = arith.truncf %10 : vector<8x256xf32> to vector<8x256xbf16>
    %c0_7 = arith.constant 0 : index
    %c0_8 = arith.constant 0 : index
    %12 = vector.load %arg4[%c0_7, %c0_8] : memref<256x256xbf16, #tpu.memory_space<vmem>>, vector<256x256xbf16>
    %cst_9 = arith.constant dense<0.000000e+00> : vector<8x256xf32>
    %13 = tpu.matmul %11, %12, %cst_9 {dimension_numbers = #tpu.dot_dimension_numbers<[1], [0], [0], [1], [0, 0, 1, 1], [], []>} : vector<8x256xbf16>, vector<256x256xbf16>, vector<8x256xf32> -> vector<8x256xf32>
    %c0_10 = arith.constant 0 : index
    %c0_11 = arith.constant 0 : index
    %14 = vector.load %arg5[%c0_10, %c0_11] : memref<1x256xf32, #tpu.memory_space<vmem>>, vector<1x256xf32>
    %15 = vector.broadcast %14 : vector<1x256xf32> to vector<8x256xf32>
    %16 = arith.addf %13, %15 : vector<8x256xf32>
    %cst_12 = arith.constant 0.000000e+00 : f32
    %17 = vector.broadcast %cst_12 : f32 to vector<8x256xf32>
    %18 = arith.cmpf ogt, %16, %17 : vector<8x256xf32>
    %cst_13 = arith.constant 2.000000e-01 : f32
    %19 = vector.broadcast %cst_13 : f32 to vector<8x256xf32>
    %20 = arith.mulf %19, %16 : vector<8x256xf32>
    %21 = arith.select %18, %16, %20 : vector<8x256xi1>, vector<8x256xf32>
    %c0_14 = arith.constant 0 : index
    %c0_15 = arith.constant 0 : index
    %22 = vector.load %arg6[%c0_14, %c0_15] : memref<1x256xbf16, #tpu.memory_space<vmem>>, vector<1x256xbf16>
    %23 = arith.truncf %21 : vector<8x256xf32> to vector<8x256xbf16>
    %cst_16 = arith.constant dense<0.000000e+00> : vector<1x8xf32>
    %24 = tpu.matmul %22, %23, %cst_16 {dimension_numbers = #tpu.dot_dimension_numbers<[1], [1], [0], [0], [0, 0, 1, 0], [], []>} : vector<1x256xbf16>, vector<8x256xbf16>, vector<1x8xf32> -> vector<1x8xf32>
    %c0_17 = arith.constant 0 : index
    %c0_18 = arith.constant 0 : index
    %25 = vector.load %arg7[%c0_17, %c0_18] : memref<1x1xf32, #tpu.memory_space<vmem>>, vector<1x1xf32>
    %26 = vector.broadcast %25 : vector<1x1xf32> to vector<1x8xf32>
    %27 = arith.addf %24, %26 : vector<1x8xf32>
    %28 = math.absf %27 : vector<1x8xf32>
    %cst_19 = arith.constant 0.000000e+00 : f32
    %29 = vector.broadcast %cst_19 : f32 to vector<1x8xf32>
    %30 = arith.subf %29, %28 : vector<1x8xf32>
    %31 = math.exp %30 : vector<1x8xf32>
    %cst_20 = arith.constant 1.000000e+00 : f32
    %32 = vector.broadcast %cst_20 : f32 to vector<1x8xf32>
    %33 = arith.addf %32, %31 : vector<1x8xf32>
    %cst_21 = arith.constant 1.000000e+00 : f32
    %34 = vector.broadcast %cst_21 : f32 to vector<1x8xf32>
    %35 = arith.divf %34, %33 : vector<1x8xf32>
    %cst_22 = arith.constant 0.000000e+00 : f32
    %36 = vector.broadcast %cst_22 : f32 to vector<1x8xf32>
    %37 = arith.cmpf oge, %27, %36 : vector<1x8xf32>
    %38 = arith.mulf %31, %35 : vector<1x8xf32>
    %39 = arith.select %37, %35, %38 : vector<1x8xi1>, vector<1x8xf32>
    %c0_23 = arith.constant 0 : index
    %c0_24 = arith.constant 0 : index
    %40 = vector.load %arg8[%c0_23, %c0_24] : memref<1x8xf32, #tpu.memory_space<vmem>>, vector<1x8xf32>
    tpu.vector_store %arg8[%c0_23, %c0_24], %39 {strides = array<i32>} : memref<1x8xf32, #tpu.memory_space<vmem>>, vector<1x8xf32>,
    return
  }
  func.func @transform_0(%arg0: i32) -> (i32, i32) {
    %c0_i32 = arith.constant 0 : i32
    %c0_i32_0 = arith.constant 0 : i32
    return %arg0, %c0_i32 : i32, i32
  }
  func.func @transform_1(%arg0: i32) -> (i32, i32) {
    %c0_i32 = arith.constant 0 : i32
    %c0_i32_0 = arith.constant 0 : i32
    %c0_i32_1 = arith.constant 0 : i32
    return %c0_i32, %c0_i32_0 : i32, i32
  }
  func.func @transform_2(%arg0: i32) -> (i32, i32) {
    %c0_i32 = arith.constant 0 : i32
    %c0_i32_0 = arith.constant 0 : i32
    %c0_i32_1 = arith.constant 0 : i32
    return %c0_i32, %c0_i32_0 : i32, i32
  }
  func.func @transform_3(%arg0: i32) -> (i32, i32) {
    %c0_i32 = arith.constant 0 : i32
    %c0_i32_0 = arith.constant 0 : i32
    %c0_i32_1 = arith.constant 0 : i32
    return %c0_i32, %c0_i32_0 : i32, i32
  }
  func.func @transform_4(%arg0: i32) -> (i32, i32) {
    %c0_i32 = arith.constant 0 : i32
    %c0_i32_0 = arith.constant 0 : i32
    %c0_i32_1 = arith.constant 0 : i32
    return %c0_i32, %c0_i32_0 : i32, i32
  }
  func.func @transform_5(%arg0: i32) -> (i32, i32) {
    %c0_i32 = arith.constant 0 : i32
    %c0_i32_0 = arith.constant 0 : i32
    %c0_i32_1 = arith.constant 0 : i32
    return %c0_i32, %c0_i32_0 : i32, i32
  }
  func.func @transform_6(%arg0: i32) -> (i32, i32) {
    %c0_i32 = arith.constant 0 : i32
    %c0_i32_0 = arith.constant 0 : i32
    %c0_i32_1 = arith.constant 0 : i32
    return %c0_i32, %c0_i32_0 : i32, i32
  }
  func.func @transform_7(%arg0: i32) -> (i32, i32) {
    %c0_i32 = arith.constant 0 : i32
    %c0_i32_0 = arith.constant 0 : i32
    return %c0_i32, %arg0 : i32, i32
  }
}

</mosaic_0001>

<llo_original>
// kernel: discriminator_forward.1
$region0: #{discriminator_forward.1}
  #allocation0 [shape = 'u32[]', space=smem, size = 0x4, offset = 0x4, fixed_abs, tag = 'smem constant byte address 0x4 - core index']
  #allocation1 [shape = 'u32[72,128]{1,0:T(1,128)}', space=vmem, size = 0x9000, scoped, tag = 'internal scratch']
  #allocation2 [shape = 'f32[1,1]{1,0:T(1,128)S(1)}', space=vmem, size = 0x200, scoped, tag = 'scoped memory for discriminator_forward.1']
  %s0 = inlined_call_operand.vmem [shape: bf16[8,784], index: 0, kind: input, shape index: {}]
  %s1 = inlined_call_operand.vmem [shape: bf16[784,256], index: 1, kind: input, shape index: {}]
  %s2 = inlined_call_operand.vmem [shape: f32[1,256], index: 2, kind: input, shape index: {}]
  %s3 = inlined_call_operand.vmem [shape: bf16[256,256], index: 3, kind: input, shape index: {}]
  %s4 = inlined_call_operand.vmem [shape: f32[1,256], index: 4, kind: input, shape index: {}]
  %s5 = inlined_call_operand.vmem [shape: bf16[1,256], index: 5, kind: input, shape index: {}]
  %s6 = inlined_call_operand.<no memory space> [shape: f32[1,1], index: 6, kind: input, shape index: {}]
  %s7 = inlined_call_operand.hbm [shape: f32[1,8], index: 7, kind: output, shape index: {}]
  %s8 = sld [smem:[#allocation0]]
  $region38: #{discriminator_forward.1} parent=0
    _
  %s10 = ssub.s32 1, %s8
  %s11 = scalar_select 0, %s10, %s8
  %v12 = vstv %s6
  %13 = vst [vmem:[#allocation2] sm:$0x1] %v12
  $region1: #{discriminator_forward.1} parent=0
    #allocation3 [shape = 'u8[512]{0}', space=vmem, size = 0x400, scoped, tag = 'output window, operand 0, single buffered']
    #allocation4 [shape = 's32[1]{0}', space=sflag, size = 0x4, scoped, tag = 'scoped memory for discriminator_forward.1']
    %14 = vsyncpa [#allocation4], 0
    // Predicated region
    $region2: #{discriminator_forward.1} parent=1 // pred_check
      _
    $region3: #{discriminator_forward.1} parent=1 // pred_check_branch
      %16 = sbr.rel (0) target = $region5
    $region4: #{discriminator_forward.1} parent=1 // pred_region
      _
    $region5: #{discriminator_forward.1} parent=1 // pred_fallthru
      _
    // Predicated region
    $region6: #{discriminator_forward.1} parent=1 // pred_check
      _
    $region7: #{discriminator_forward.1} parent=1 // pred_check_branch
      %18 = sbr.rel (0) target = $region9
    $region8: #{discriminator_forward.1} parent=1 // pred_region
      _
    $region9: #{discriminator_forward.1} parent=1 // pred_fallthru
      _
    // Predicated region
    $region10: #{discriminator_forward.1} parent=1 // pred_check
      _
    $region11: #{discriminator_forward.1} parent=1 // pred_check_branch
      %20 = sbr.rel (0) target = $region13
    $region12: #{discriminator_forward.1} parent=1 // pred_region
      _
    $region13: #{discriminator_forward.1} parent=1 // pred_fallthru
      _
    // Predicated region
    $region14: #{discriminator_forward.1} parent=1 // pred_check
      _
    $region15: #{discriminator_forward.1} parent=1 // pred_check_branch
      %22 = sbr.rel (0) target = $region17
    $region16: #{discriminator_forward.1} parent=1 // pred_region
      _
    $region17: #{discriminator_forward.1} parent=1 // pred_fallthru
      _
    // Predicated region
    $region18: #{discriminator_forward.1} parent=1 // pred_check
      _
    $region19: #{discriminator_forward.1} parent=1 // pred_check_branch
      %24 = sbr.rel (0) target = $region21
    $region20: #{discriminator_forward.1} parent=1 // pred_region
      _
    $region21: #{discriminator_forward.1} parent=1 // pred_fallthru
      _
    // Predicated region
    $region22: #{discriminator_forward.1} parent=1 // pred_check
      _
    $region23: #{discriminator_forward.1} parent=1 // pred_check_branch
      %26 = sbr.rel (0) target = $region25
    $region24: #{discriminator_forward.1} parent=1 // pred_region
      _
    $region25: #{discriminator_forward.1} parent=1 // pred_fallthru
      _
    // Predicated region
    $region26: #{discriminator_forward.1} parent=1 // pred_check
      _
    $region27: #{discriminator_forward.1} parent=1 // pred_check_branch
      %28 = sbr.rel (0) target = $region29
    $region28: #{discriminator_forward.1} parent=1 // pred_region
      _
    $region29: #{discriminator_forward.1} parent=1 // pred_fallthru
      _
    %v30 = vld [vmem:[%s0] sm:$0xff]
    %v31 = vld [vmem:[%s0 + $0x8] sm:$0xff]
    %v32 = vld [vmem:[%s0 + $0x10] sm:$0xff]
    %v33 = vld [vmem:[%s0 + $0x18] sm:$0xf]
    %v34 = vld [vmem:[%s1] sm:$0xff]
    %v35 = vld [vmem:[%s1 + $0x8] sm:$0xff]
    %v36 = vld [vmem:[%s1 + $0x10] sm:$0xff]
    %v37 = vld [vmem:[%s1 + $0x18] sm:$0xff]
    %v38 = vld [vmem:[%s1 + $0x20] sm:$0xff]
    %v39 = vld [vmem:[%s1 + $0x28] sm:$0xff]
    %v40 = vld [vmem:[%s1 + $0x30] sm:$0xff]
    %v41 = vld [vmem:[%s1 + $0x38] sm:$0xff]
    %v42 = vld [vmem:[%s1 + $0x40] sm:$0xff]
    %v43 = vld [vmem:[%s1 + $0x48] sm:$0xff]
    %v44 = vld [vmem:[%s1 + $0x50] sm:$0xff]
    %v45 = vld [vmem:[%s1 + $0x58] sm:$0xff]
    %v46 = vld [vmem:[%s1 + $0x60] sm:$0xff]
    %v47 = vld [vmem:[%s1 + $0x68] sm:$0xff]
    %v48 = vld [vmem:[%s1 + $0x70] sm:$0xff]
    %v49 = vld [vmem:[%s1 + $0x78] sm:$0xff]
    %v50 = vld [vmem:[%s1 + $0x80] sm:$0xff]
    %v51 = vld [vmem:[%s1 + $0x88] sm:$0xff]
    %v52 = vld [vmem:[%s1 + $0x90] sm:$0xff]
    %v53 = vld [vmem:[%s1 + $0x98] sm:$0xff]
    %v54 = vld [vmem:[%s1 + $0xa0] sm:$0xff]
    %v55 = vld [vmem:[%s1 + $0xa8] sm:$0xff]
    %v56 = vld [vmem:[%s1 + $0xb0] sm:$0xff]
    %v57 = vld [vmem:[%s1 + $0xb8] sm:$0xff]
    %v58 = vld [vmem:[%s1 + $0xc0] sm:$0xff]
    %v59 = vld [vmem:[%s1 + $0xc8] sm:$0xff]
    %v60 = vld [vmem:[%s1 + $0xd0] sm:$0xff]
    %v61 = vld [vmem:[%s1 + $0xd8] sm:$0xff]
    %v62 = vld [vmem:[%s1 + $0xe0] sm:$0xff]
    %v63 = vld [vmem:[%s1 + $0xe8] sm:$0xff]
    %v64 = vld [vmem:[%s1 + $0xf0] sm:$0xff]
    %v65 = vld [vmem:[%s1 + $0xf8] sm:$0xff]
    %v66 = vld [vmem:[%s1 + $0x100] sm:$0xff]
    %v67 = vld [vmem:[%s1 + $0x108] sm:$0xff]
    %v68 = vld [vmem:[%s1 + $0x110] sm:$0xff]
    %v69 = vld [vmem:[%s1 + $0x118] sm:$0xff]
    %v70 = vld [vmem:[%s1 + $0x120] sm:$0xff]
    %v71 = vld [vmem:[%s1 + $0x128] sm:$0xff]
    %v72 = vld [vmem:[%s1 + $0x130] sm:$0xff]
    %v73 = vld [vmem:[%s1 + $0x138] sm:$0xff]
    %v74 = vld [vmem:[%s1 + $0x140] sm:$0xff]
    %v75 = vld [vmem:[%s1 + $0x148] sm:$0xff]
    %v76 = vld [vmem:[%s1 + $0x150] sm:$0xff]
    %v77 = vld [vmem:[%s1 + $0x158] sm:$0xff]
    %v78 = vld [vmem:[%s1 + $0x160] sm:$0xff]
    %v79 = vld [vmem:[%s1 + $0x168] sm:$0xff]
    %v80 = vld [vmem:[%s1 + $0x170] sm:$0xff]
    %v81 = vld [vmem:[%s1 + $0x178] sm:$0xff]
    %v82 = vld [vmem:[%s1 + $0x180] sm:$0xff]
    %v83 = vld [vmem:[%s1 + $0x188] sm:$0xff]
    %v84 = vld [vmem:[%s1 + $0x190] sm:$0xff]
    %v85 = vld [vmem:[%s1 + $0x198] sm:$0xff]
    %v86 = vld [vmem:[%s1 + $0x1a0] sm:$0xff]
    %v87 = vld [vmem:[%s1 + $0x1a8] sm:$0xff]
    %v88 = vld [vmem:[%s1 + $0x1b0] sm:$0xff]
    %v89 = vld [vmem:[%s1 + $0x1b8] sm:$0xff]
    %v90 = vld [vmem:[%s1 + $0x1c0] sm:$0xff]
    %v91 = vld [vmem:[%s1 + $0x1c8] sm:$0xff]
    %v92 = vld [vmem:[%s1 + $0x1d0] sm:$0xff]
    %v93 = vld [vmem:[%s1 + $0x1d8] sm:$0xff]
    %v94 = vld [vmem:[%s1 + $0x1e0] sm:$0xff]
    %v95 = vld [vmem:[%s1 + $0x1e8] sm:$0xff]
    %v96 = vld [vmem:[%s1 + $0x1f0] sm:$0xff]
    %v97 = vld [vmem:[%s1 + $0x1f8] sm:$0xff]
    %v98 = vld [vmem:[%s1 + $0x200] sm:$0xff]
    %v99 = vld [vmem:[%s1 + $0x208] sm:$0xff]
    %v100 = vld [vmem:[%s1 + $0x210] sm:$0xff]
    %v101 = vld [vmem:[%s1 + $0x218] sm:$0xff]
    %v102 = vld [vmem:[%s1 + $0x220] sm:$0xff]
    %v103 = vld [vmem:[%s1 + $0x228] sm:$0xff]
    %v104 = vld [vmem:[%s1 + $0x230] sm:$0xff]
    %v105 = vld [vmem:[%s1 + $0x238] sm:$0xff]
    %v106 = vld [vmem:[%s1 + $0x240] sm:$0xff]
    %v107 = vld [vmem:[%s1 + $0x248] sm:$0xff]
    %v108 = vld [vmem:[%s1 + $0x250] sm:$0xff]
    %v109 = vld [vmem:[%s1 + $0x258] sm:$0xff]
    %v110 = vld [vmem:[%s1 + $0x260] sm:$0xff]
    %v111 = vld [vmem:[%s1 + $0x268] sm:$0xff]
    %v112 = vld [vmem:[%s1 + $0x270] sm:$0xff]
    %v113 = vld [vmem:[%s1 + $0x278] sm:$0xff]
    %v114 = vld [vmem:[%s1 + $0x280] sm:$0xff]
    %v115 = vld [vmem:[%s1 + $0x288] sm:$0xff]
    %v116 = vld [vmem:[%s1 + $0x290] sm:$0xff]
    %v117 = vld [vmem:[%s1 + $0x298] sm:$0xff]
    %v118 = vld [vmem:[%s1 + $0x2a0] sm:$0xff]
    %v119 = vld [vmem:[%s1 + $0x2a8] sm:$0xff]
    %v120 = vld [vmem:[%s1 + $0x2b0] sm:$0xff]
    %v121 = vld [vmem:[%s1 + $0x2b8] sm:$0xff]
    %v122 = vld [vmem:[%s1 + $0x2c0] sm:$0xff]
    %v123 = vld [vmem:[%s1 + $0x2c8] sm:$0xff]
    %v124 = vld [vmem:[%s1 + $0x2d0] sm:$0xff]
    %v125 = vld [vmem:[%s1 + $0x2d8] sm:$0xff]
    %v126 = vld [vmem:[%s1 + $0x2e0] sm:$0xff]
    %v127 = vld [vmem:[%s1 + $0x2e8] sm:$0xff]
    %v128 = vld [vmem:[%s1 + $0x2f0] sm:$0xff]
    %v129 = vld [vmem:[%s1 + $0x2f8] sm:$0xff]
    %v130 = vld [vmem:[%s1 + $0x300] sm:$0xff]
    %v131 = vld [vmem:[%s1 + $0x308] sm:$0xff]
    %v132 = vld [vmem:[%s2] sm:$0x3]
    %v134 = vperm.slane %v132, 0
    %v135 = vperm.slane %v132, 1
    %v142 = vunpack.c.l.b16 %v30
    %v143 = vunpack.c.h.b16 %v30
    %v144 = vunpack.c.l.b16 %v31
    %v145 = vunpack.c.h.b16 %v31
    %v146 = vunpack.c.l.b16 %v32
    %v147 = vunpack.c.h.b16 %v32
    %v148 = vunpack.c.l.b16 %v33
    %v149 = vpack.c.b16 %v142, %v142
    %v150 = vpack.c.b16 %v143, %v143
    %v151 = vpack.c.b16 %v144, %v144
    %v152 = vpack.c.b16 %v145, %v145
    %v153 = vpack.c.b16 %v146, %v146
    %v154 = vpack.c.b16 %v147, %v147
    %v155 = vpack.c.b16 %v148, %v148
    %v260 = vunpack.c.l.b16 %v34
    %v261 = vunpack.c.h.b16 %v34
    %v262 = vunpack.c.l.b16 %v35
    %v263 = vunpack.c.h.b16 %v35
    %v264 = vunpack.c.l.b16 %v36
    %v265 = vunpack.c.h.b16 %v36
    %v266 = vunpack.c.l.b16 %v37
    %v267 = vunpack.c.h.b16 %v37
    %v268 = vunpack.c.l.b16 %v38
    %v269 = vunpack.c.h.b16 %v38
    %v270 = vunpack.c.l.b16 %v39
    %v271 = vunpack.c.h.b16 %v39
    %v272 = vunpack.c.l.b16 %v40
    %v273 = vunpack.c.h.b16 %v40
    %v274 = vunpack.c.l.b16 %v41
    %v275 = vunpack.c.h.b16 %v41
    %v276 = vunpack.c.l.b16 %v42
    %v277 = vunpack.c.h.b16 %v42
    %v278 = vunpack.c.l.b16 %v43
    %v279 = vunpack.c.h.b16 %v43
    %v280 = vunpack.c.l.b16 %v44
    %v281 = vunpack.c.h.b16 %v44
    %v282 = vunpack.c.l.b16 %v45
    %v283 = vunpack.c.h.b16 %v45
    %v284 = vunpack.c.l.b16 %v46
    %v285 = vunpack.c.h.b16 %v46
    %v286 = vunpack.c.l.b16 %v47
    %v287 = vunpack.c.h.b16 %v47
    %v288 = vunpack.c.l.b16 %v48
    %v289 = vunpack.c.h.b16 %v48
    %v290 = vunpack.c.l.b16 %v49
    %v291 = vunpack.c.h.b16 %v49
    %v292 = vunpack.c.l.b16 %v50
    %v293 = vunpack.c.h.b16 %v50
    %v294 = vunpack.c.l.b16 %v51
    %v295 = vunpack.c.h.b16 %v51
    %v296 = vunpack.c.l.b16 %v52
    %v297 = vunpack.c.h.b16 %v52
    %v298 = vunpack.c.l.b16 %v53
    %v299 = vunpack.c.h.b16 %v53
    %v300 = vunpack.c.l.b16 %v54
    %v301 = vunpack.c.h.b16 %v54
    %v302 = vunpack.c.l.b16 %v55
    %v303 = vunpack.c.h.b16 %v55
    %v304 = vunpack.c.l.b16 %v56
    %v305 = vunpack.c.h.b16 %v56
    %v306 = vunpack.c.l.b16 %v57
    %v307 = vunpack.c.h.b16 %v57
    %v308 = vunpack.c.l.b16 %v58
    %v309 = vunpack.c.h.b16 %v58
    %v310 = vunpack.c.l.b16 %v59
    %v311 = vunpack.c.h.b16 %v59
    %v312 = vunpack.c.l.b16 %v60
    %v313 = vunpack.c.h.b16 %v60
    %v314 = vunpack.c.l.b16 %v61
    %v315 = vunpack.c.h.b16 %v61
    %v316 = vunpack.c.l.b16 %v62
    %v317 = vunpack.c.h.b16 %v62
    %v318 = vunpack.c.l.b16 %v63
    %v319 = vunpack.c.h.b16 %v63
    %v320 = vunpack.c.l.b16 %v64
    %v321 = vunpack.c.h.b16 %v64
    %v322 = vunpack.c.l.b16 %v65
    %v323 = vunpack.c.h.b16 %v65
    %v324 = vunpack.c.l.b16 %v66
    %v325 = vunpack.c.h.b16 %v66
    %v326 = vunpack.c.l.b16 %v67
    %v327 = vunpack.c.h.b16 %v67
    %v328 = vunpack.c.l.b16 %v68
    %v329 = vunpack.c.h.b16 %v68
    %v330 = vunpack.c.l.b16 %v69
    %v331 = vunpack.c.h.b16 %v69
    %v332 = vunpack.c.l.b16 %v70
    %v333 = vunpack.c.h.b16 %v70
    %v334 = vunpack.c.l.b16 %v71
    %v335 = vunpack.c.h.b16 %v71
    %v336 = vunpack.c.l.b16 %v72
    %v337 = vunpack.c.h.b16 %v72
    %v338 = vunpack.c.l.b16 %v73
    %v339 = vunpack.c.h.b16 %v73
    %v340 = vunpack.c.l.b16 %v74
    %v341 = vunpack.c.h.b16 %v74
    %v342 = vunpack.c.l.b16 %v75
    %v343 = vunpack.c.h.b16 %v75
    %v344 = vunpack.c.l.b16 %v76
    %v345 = vunpack.c.h.b16 %v76
    %v346 = vunpack.c.l.b16 %v77
    %v347 = vunpack.c.h.b16 %v77
    %v348 = vunpack.c.l.b16 %v78
    %v349 = vunpack.c.h.b16 %v78
    %v350 = vunpack.c.l.b16 %v79
    %v351 = vunpack.c.h.b16 %v79
    %v352 = vunpack.c.l.b16 %v80
    %v353 = vunpack.c.h.b16 %v80
    %v354 = vunpack.c.l.b16 %v81
    %v355 = vunpack.c.h.b16 %v81
    %v356 = vunpack.c.l.b16 %v82
    %v357 = vunpack.c.h.b16 %v82
    %v358 = vunpack.c.l.b16 %v83
    %v359 = vunpack.c.h.b16 %v83
    %v360 = vunpack.c.l.b16 %v84
    %v361 = vunpack.c.h.b16 %v84
    %v362 = vunpack.c.l.b16 %v85
    %v363 = vunpack.c.h.b16 %v85
    %v364 = vunpack.c.l.b16 %v86
    %v365 = vunpack.c.h.b16 %v86
    %v366 = vunpack.c.l.b16 %v87
    %v367 = vunpack.c.h.b16 %v87
    %v368 = vunpack.c.l.b16 %v88
    %v369 = vunpack.c.h.b16 %v88
    %v370 = vunpack.c.l.b16 %v89
    %v371 = vunpack.c.h.b16 %v89
    %v372 = vunpack.c.l.b16 %v90
    %v373 = vunpack.c.h.b16 %v90
    %v374 = vunpack.c.l.b16 %v91
    %v375 = vunpack.c.h.b16 %v91
    %v376 = vunpack.c.l.b16 %v92
    %v377 = vunpack.c.h.b16 %v92
    %v378 = vunpack.c.l.b16 %v93
    %v379 = vunpack.c.h.b16 %v93
    %v380 = vunpack.c.l.b16 %v94
    %v381 = vunpack.c.h.b16 %v94
    %v382 = vunpack.c.l.b16 %v95
    %v383 = vunpack.c.h.b16 %v95
    %v384 = vunpack.c.l.b16 %v96
    %v385 = vunpack.c.h.b16 %v96
    %v386 = vunpack.c.l.b16 %v97
    %v387 = vunpack.c.h.b16 %v97
    %v388 = vunpack.c.l.b16 %v98
    %v389 = vunpack.c.h.b16 %v98
    %v390 = vunpack.c.l.b16 %v99
    %v391 = vunpack.c.h.b16 %v99
    %v392 = vunpack.c.l.b16 %v100
    %v393 = vunpack.c.h.b16 %v100
    %v394 = vunpack.c.l.b16 %v101
    %v395 = vunpack.c.h.b16 %v101
    %v396 = vunpack.c.l.b16 %v102
    %v397 = vunpack.c.h.b16 %v102
    %v398 = vunpack.c.l.b16 %v103
    %v399 = vunpack.c.h.b16 %v103
    %v400 = vunpack.c.l.b16 %v104
    %v401 = vunpack.c.h.b16 %v104
    %v402 = vunpack.c.l.b16 %v105
    %v403 = vunpack.c.h.b16 %v105
    %v404 = vunpack.c.l.b16 %v106
    %v405 = vunpack.c.h.b16 %v106
    %v406 = vunpack.c.l.b16 %v107
    %v407 = vunpack.c.h.b16 %v107
    %v408 = vunpack.c.l.b16 %v108
    %v409 = vunpack.c.h.b16 %v108
    %v410 = vunpack.c.l.b16 %v109
    %v411 = vunpack.c.h.b16 %v109
    %v412 = vunpack.c.l.b16 %v110
    %v413 = vunpack.c.h.b16 %v110
    %v414 = vunpack.c.l.b16 %v111
    %v415 = vunpack.c.h.b16 %v111
    %v416 = vunpack.c.l.b16 %v112
    %v417 = vunpack.c.h.b16 %v112
    %v418 = vunpack.c.l.b16 %v113
    %v419 = vunpack.c.h.b16 %v113
    %v420 = vunpack.c.l.b16 %v114
    %v421 = vunpack.c.h.b16 %v114
    %v422 = vunpack.c.l.b16 %v115
    %v423 = vunpack.c.h.b16 %v115
    %v424 = vunpack.c.l.b16 %v116
    %v425 = vunpack.c.h.b16 %v116
    %v426 = vunpack.c.l.b16 %v117
    %v427 = vunpack.c.h.b16 %v117
    %v428 = vunpack.c.l.b16 %v118
    %v429 = vunpack.c.h.b16 %v118
    %v430 = vunpack.c.l.b16 %v119
    %v431 = vunpack.c.h.b16 %v119
    %v432 = vunpack.c.l.b16 %v120
    %v433 = vunpack.c.h.b16 %v120
    %v434 = vunpack.c.l.b16 %v121
    %v435 = vunpack.c.h.b16 %v121
    %v436 = vunpack.c.l.b16 %v122
    %v437 = vunpack.c.h.b16 %v122
    %v438 = vunpack.c.l.b16 %v123
    %v439 = vunpack.c.h.b16 %v123
    %v440 = vunpack.c.l.b16 %v124
    %v441 = vunpack.c.h.b16 %v124
    %v442 = vunpack.c.l.b16 %v125
    %v443 = vunpack.c.h.b16 %v125
    %v444 = vunpack.c.l.b16 %v126
    %v445 = vunpack.c.h.b16 %v126
    %v446 = vunpack.c.l.b16 %v127
    %v447 = vunpack.c.h.b16 %v127
    %v448 = vunpack.c.l.b16 %v128
    %v449 = vunpack.c.h.b16 %v128
    %v450 = vunpack.c.l.b16 %v129
    %v451 = vunpack.c.h.b16 %v129
    %v452 = vunpack.c.l.b16 %v130
    %v453 = vunpack.c.h.b16 %v130
    %v454 = vunpack.c.l.b16 %v131
    %v455 = vunpack.c.h.b16 %v131
    %v456 = vpack.c.b16 %v262, %v260
    %v457 = vpack.c.b16 %v263, %v261
    %v458 = vpack.c.b16 %v266, %v264
    %v459 = vpack.c.b16 %v267, %v265
    %v460 = vpack.c.b16 %v270, %v268
    %v461 = vpack.c.b16 %v271, %v269
    %v462 = vpack.c.b16 %v274, %v272
    %v463 = vpack.c.b16 %v275, %v273
    %v464 = vpack.c.b16 %v278, %v276
    %v465 = vpack.c.b16 %v279, %v277
    %v466 = vpack.c.b16 %v282, %v280
    %v467 = vpack.c.b16 %v283, %v281
    %v468 = vpack.c.b16 %v286, %v284
    %v469 = vpack.c.b16 %v287, %v285
    %v470 = vpack.c.b16 %v290, %v288
    %v471 = vpack.c.b16 %v291, %v289
    %v472 = vpack.c.b16 %v294, %v292
    %v473 = vpack.c.b16 %v295, %v293
    %v474 = vpack.c.b16 %v298, %v296
    %v475 = vpack.c.b16 %v299, %v297
    %v476 = vpack.c.b16 %v302, %v300
    %v477 = vpack.c.b16 %v303, %v301
    %v478 = vpack.c.b16 %v306, %v304
    %v479 = vpack.c.b16 %v307, %v305
    %v480 = vpack.c.b16 %v310, %v308
    %v481 = vpack.c.b16 %v311, %v309
    %v482 = vpack.c.b16 %v314, %v312
    %v483 = vpack.c.b16 %v315, %v313
    %v484 = vpack.c.b16 %v318, %v316
    %v485 = vpack.c.b16 %v319, %v317
    %v486 = vpack.c.b16 %v322, %v320
    %v487 = vpack.c.b16 %v323, %v321
    %v488 = vpack.c.b16 %v326, %v324
    %v489 = vpack.c.b16 %v327, %v325
    %v490 = vpack.c.b16 %v330, %v328
    %v491 = vpack.c.b16 %v331, %v329
    %v492 = vpack.c.b16 %v334, %v332
    %v493 = vpack.c.b16 %v335, %v333
    %v494 = vpack.c.b16 %v338, %v336
    %v495 = vpack.c.b16 %v339, %v337
    %v496 = vpack.c.b16 %v342, %v340
    %v497 = vpack.c.b16 %v343, %v341
    %v498 = vpack.c.b16 %v346, %v344
    %v499 = vpack.c.b16 %v347, %v345
    %v500 = vpack.c.b16 %v350, %v348
    %v501 = vpack.c.b16 %v351, %v349
    %v502 = vpack.c.b16 %v354, %v352
    %v503 = vpack.c.b16 %v355, %v353
    %v504 = vpack.c.b16 %v358, %v356
    %v505 = vpack.c.b16 %v359, %v357
    %v506 = vpack.c.b16 %v362, %v360
    %v507 = vpack.c.b16 %v363, %v361
    %v508 = vpack.c.b16 %v366, %v364
    %v509 = vpack.c.b16 %v367, %v365
    %v510 = vpack.c.b16 %v370, %v368
    %v511 = vpack.c.b16 %v371, %v369
    %v512 = vpack.c.b16 %v374, %v372
    %v513 = vpack.c.b16 %v375, %v373
    %v514 = vpack.c.b16 %v378, %v376
    %v515 = vpack.c.b16 %v379, %v377
    %v516 = vpack.c.b16 %v382, %v380
    %v517 = vpack.c.b16 %v383, %v381
    %v518 = vpack.c.b16 %v386, %v384
    %v519 = vpack.c.b16 %v387, %v385
    %v520 = vpack.c.b16 %v390, %v388
    %v521 = vpack.c.b16 %v391, %v389
    %v522 = vpack.c.b16 %v394, %v392
    %v523 = vpack.c.b16 %v395, %v393
    %v524 = vpack.c.b16 %v398, %v396
    %v525 = vpack.c.b16 %v399, %v397
    %v526 = vpack.c.b16 %v402, %v400
    %v527 = vpack.c.b16 %v403, %v401
    %v528 = vpack.c.b16 %v406, %v404
    %v529 = vpack.c.b16 %v407, %v405
    %v530 = vpack.c.b16 %v410, %v408
    %v531 = vpack.c.b16 %v411, %v409
    %v532 = vpack.c.b16 %v414, %v412
    %v533 = vpack.c.b16 %v415, %v413
    %v534 = vpack.c.b16 %v418, %v416
    %v535 = vpack.c.b16 %v419, %v417
    %v536 = vpack.c.b16 %v422, %v420
    %v537 = vpack.c.b16 %v423, %v421
    %v538 = vpack.c.b16 %v426, %v424
    %v539 = vpack.c.b16 %v427, %v425
    %v540 = vpack.c.b16 %v430, %v428
    %v541 = vpack.c.b16 %v431, %v429
    %v542 = vpack.c.b16 %v434, %v432
    %v543 = vpack.c.b16 %v435, %v433
    %v544 = vpack.c.b16 %v438, %v436
    %v545 = vpack.c.b16 %v439, %v437
    %v546 = vpack.c.b16 %v442, %v440
    %v547 = vpack.c.b16 %v443, %v441
    %v548 = vpack.c.b16 %v446, %v444
    %v549 = vpack.c.b16 %v447, %v445
    %v550 = vpack.c.b16 %v450, %v448
    %v551 = vpack.c.b16 %v451, %v449
    %v552 = vpack.c.b16 %v454, %v452
    %v553 = vpack.c.b16 %v455, %v453
    %vm652 = vcmask 130048
    %v654 = vsel %vm652, %v155, 0
    %656 = vmatpush.bf16.msra.mxu0 %v470
    %657 = vmatpush.bf16.msra.mxu0 %v468
    %658 = vmatpush.bf16.msra.mxu0 %v466
    %659 = vmatpush.bf16.msra.mxu0 %v464
    %660 = vmatpush.bf16.msra.mxu0 %v462
    %661 = vmatpush.bf16.msra.mxu0 %v460
    %662 = vmatpush.bf16.msra.mxu0 %v458
    %663 = vmatpush.bf16.msra.mxu0 %v456
    %664 = vmatmul.bf16.gmra.mxu0 %v149
    %v665 = vpop.f32.mrf.mxu0
    %v666 = vadd.f32 %v134, %v665
    %v667 = vpop.f32.mrf.mxu0
    %668 = vdwg.mxu0
    %669 = vmatpush.bf16.msra.mxu0 %v486
    %670 = vmatpush.bf16.msra.mxu0 %v484
    %671 = vmatpush.bf16.msra.mxu0 %v482
    %672 = vmatpush.bf16.msra.mxu0 %v480
    %673 = vmatpush.bf16.msra.mxu0 %v478
    %674 = vmatpush.bf16.msra.mxu0 %v476
    %675 = vmatpush.bf16.msra.mxu0 %v474
    %676 = vmatpush.bf16.msra.mxu0 %v472
    %677 = vmatmul.bf16.gmra.mxu0 %v150
    %v678 = vpop.f32.mrf.mxu0
    %v679 = vadd.f32 %v666, %v678
    %v680 = vpop.f32.mrf.mxu0
    %681 = vdwg.mxu0
    %682 = vmatpush.bf16.msra.mxu0 %v502
    %683 = vmatpush.bf16.msra.mxu0 %v500
    %684 = vmatpush.bf16.msra.mxu0 %v498
    %685 = vmatpush.bf16.msra.mxu0 %v496
    %686 = vmatpush.bf16.msra.mxu0 %v494
    %687 = vmatpush.bf16.msra.mxu0 %v492
    %688 = vmatpush.bf16.msra.mxu0 %v490
    %689 = vmatpush.bf16.msra.mxu0 %v488
    %690 = vmatmul.bf16.gmra.mxu0 %v151
    %v691 = vpop.f32.mrf.mxu0
    %v692 = vadd.f32 %v679, %v691
    %v693 = vpop.f32.mrf.mxu0
    %694 = vdwg.mxu0
    %695 = vmatpush.bf16.msra.mxu0 %v518
    %696 = vmatpush.bf16.msra.mxu0 %v516
    %697 = vmatpush.bf16.msra.mxu0 %v514
    %698 = vmatpush.bf16.msra.mxu0 %v512
    %699 = vmatpush.bf16.msra.mxu0 %v510
    %700 = vmatpush.bf16.msra.mxu0 %v508
    %701 = vmatpush.bf16.msra.mxu0 %v506
    %702 = vmatpush.bf16.msra.mxu0 %v504
    %703 = vmatmul.bf16.gmra.mxu0 %v152
    %v704 = vpop.f32.mrf.mxu0
    %v705 = vadd.f32 %v692, %v704
    %v706 = vpop.f32.mrf.mxu0
    %707 = vdwg.mxu0
    %708 = vmatpush.bf16.msra.mxu0 %v534
    %709 = vmatpush.bf16.msra.mxu0 %v532
    %710 = vmatpush.bf16.msra.mxu0 %v530
    %711 = vmatpush.bf16.msra.mxu0 %v528
    %712 = vmatpush.bf16.msra.mxu0 %v526
    %713 = vmatpush.bf16.msra.mxu0 %v524
    %714 = vmatpush.bf16.msra.mxu0 %v522
    %715 = vmatpush.bf16.msra.mxu0 %v520
    %716 = vmatmul.bf16.gmra.mxu0 %v153
    %v717 = vpop.f32.mrf.mxu0
    %v718 = vadd.f32 %v705, %v717
    %v719 = vpop.f32.mrf.mxu0
    %720 = vdwg.mxu0
    %721 = vmatpush.bf16.msra.mxu0 %v550
    %722 = vmatpush.bf16.msra.mxu0 %v548
    %723 = vmatpush.bf16.msra.mxu0 %v546
    %724 = vmatpush.bf16.msra.mxu0 %v544
    %725 = vmatpush.bf16.msra.mxu0 %v542
    %726 = vmatpush.bf16.msra.mxu0 %v540
    %727 = vmatpush.bf16.msra.mxu0 %v538
    %728 = vmatpush.bf16.msra.mxu0 %v536
    %729 = vmatmul.bf16.gmra.mxu0 %v154
    %v730 = vpop.f32.mrf.mxu0
    %v731 = vadd.f32 %v718, %v730
    %v732 = vpop.f32.mrf.mxu0
    %733 = vdwg.mxu0
    %734 = vmatpush.bf16.msra.mxu0 0
    %735 = vmatpush.bf16.msra.mxu0 0
    %736 = vmatpush.bf16.msra.mxu0 0
    %737 = vmatpush.bf16.msra.mxu0 0
    %738 = vmatpush.bf16.msra.mxu0 0
    %739 = vmatpush.bf16.msra.mxu0 0
    %740 = vmatpush.bf16.msra.mxu0 0
    %741 = vmatpush.bf16.msra.mxu0 %v552
    %742 = vmatmul.bf16.gmra.mxu0 %v654
    %v743 = vpop.f32.mrf.mxu0
    %v744 = vadd.f32 %v731, %v743
    %v745 = vpop.f32.mrf.mxu0
    %746 = vdwg.mxu0
    %747 = vmatpush.bf16.msra.mxu0 %v471
    %748 = vmatpush.bf16.msra.mxu0 %v469
    %749 = vmatpush.bf16.msra.mxu0 %v467
    %750 = vmatpush.bf16.msra.mxu0 %v465
    %751 = vmatpush.bf16.msra.mxu0 %v463
    %752 = vmatpush.bf16.msra.mxu0 %v461
    %753 = vmatpush.bf16.msra.mxu0 %v459
    %754 = vmatpush.bf16.msra.mxu0 %v457
    %755 = vmatmul.bf16.gmra.mxu0 %v149
    %v756 = vpop.f32.mrf.mxu0
    %v757 = vadd.f32 %v135, %v756
    %v758 = vpop.f32.mrf.mxu0
    %759 = vdwg.mxu0
    %760 = vmatpush.bf16.msra.mxu0 %v487
    %761 = vmatpush.bf16.msra.mxu0 %v485
    %762 = vmatpush.bf16.msra.mxu0 %v483
    %763 = vmatpush.bf16.msra.mxu0 %v481
    %764 = vmatpush.bf16.msra.mxu0 %v479
    %765 = vmatpush.bf16.msra.mxu0 %v477
    %766 = vmatpush.bf16.msra.mxu0 %v475
    %767 = vmatpush.bf16.msra.mxu0 %v473
    %768 = vmatmul.bf16.gmra.mxu0 %v150
    %v769 = vpop.f32.mrf.mxu0
    %v770 = vadd.f32 %v757, %v769
    %v771 = vpop.f32.mrf.mxu0
    %772 = vdwg.mxu0
    %773 = vmatpush.bf16.msra.mxu0 %v503
    %774 = vmatpush.bf16.msra.mxu0 %v501
    %775 = vmatpush.bf16.msra.mxu0 %v499
    %776 = vmatpush.bf16.msra.mxu0 %v497
    %777 = vmatpush.bf16.msra.mxu0 %v495
    %778 = vmatpush.bf16.msra.mxu0 %v493
    %779 = vmatpush.bf16.msra.mxu0 %v491
    %780 = vmatpush.bf16.msra.mxu0 %v489
    %781 = vmatmul.bf16.gmra.mxu0 %v151
    %v782 = vpop.f32.mrf.mxu0
    %v783 = vadd.f32 %v770, %v782
    %v784 = vpop.f32.mrf.mxu0
    %785 = vdwg.mxu0
    %786 = vmatpush.bf16.msra.mxu0 %v519
    %787 = vmatpush.bf16.msra.mxu0 %v517
    %788 = vmatpush.bf16.msra.mxu0 %v515
    %789 = vmatpush.bf16.msra.mxu0 %v513
    %790 = vmatpush.bf16.msra.mxu0 %v511
    %791 = vmatpush.bf16.msra.mxu0 %v509
    %792 = vmatpush.bf16.msra.mxu0 %v507
    %793 = vmatpush.bf16.msra.mxu0 %v505
    %794 = vmatmul.bf16.gmra.mxu0 %v152
    %v795 = vpop.f32.mrf.mxu0
    %v796 = vadd.f32 %v783, %v795
    %v797 = vpop.f32.mrf.mxu0
    %798 = vdwg.mxu0
    %799 = vmatpush.bf16.msra.mxu0 %v535
    %800 = vmatpush.bf16.msra.mxu0 %v533
    %801 = vmatpush.bf16.msra.mxu0 %v531
    %802 = vmatpush.bf16.msra.mxu0 %v529
    %803 = vmatpush.bf16.msra.mxu0 %v527
    %804 = vmatpush.bf16.msra.mxu0 %v525
    %805 = vmatpush.bf16.msra.mxu0 %v523
    %806 = vmatpush.bf16.msra.mxu0 %v521
    %807 = vmatmul.bf16.gmra.mxu0 %v153
    %v808 = vpop.f32.mrf.mxu0
    %v809 = vadd.f32 %v796, %v808
    %v810 = vpop.f32.mrf.mxu0
    %811 = vdwg.mxu0
    %812 = vmatpush.bf16.msra.mxu0 %v551
    %813 = vmatpush.bf16.msra.mxu0 %v549
    %814 = vmatpush.bf16.msra.mxu0 %v547
    %815 = vmatpush.bf16.msra.mxu0 %v545
    %816 = vmatpush.bf16.msra.mxu0 %v543
    %817 = vmatpush.bf16.msra.mxu0 %v541
    %818 = vmatpush.bf16.msra.mxu0 %v539
    %819 = vmatpush.bf16.msra.mxu0 %v537
    %820 = vmatmul.bf16.gmra.mxu0 %v154
    %v821 = vpop.f32.mrf.mxu0
    %v822 = vadd.f32 %v809, %v821
    %v823 = vpop.f32.mrf.mxu0
    %824 = vdwg.mxu0
    %825 = vmatpush.bf16.msra.mxu0 0
    %826 = vmatpush.bf16.msra.mxu0 0
    %827 = vmatpush.bf16.msra.mxu0 0
    %828 = vmatpush.bf16.msra.mxu0 0
    %829 = vmatpush.bf16.msra.mxu0 0
    %830 = vmatpush.bf16.msra.mxu0 0
    %831 = vmatpush.bf16.msra.mxu0 0
    %832 = vmatpush.bf16.msra.mxu0 %v553
    %833 = vmatmul.bf16.gmra.mxu0 %v654
    %v834 = vpop.f32.mrf.mxu0
    %v835 = vadd.f32 %v822, %v834
    %v836 = vpop.f32.mrf.mxu0
    %837 = vdwg.mxu0
    %vm838 = vcmp.gt.f32.partialorder %v744, 0.0
    %vm839 = vcmp.gt.f32.partialorder %v835, 0.0
    %v840 = vmul.f32 %v744, 0.2
    %v841 = vmul.f32 %v835, 0.2
    %v842 = vsel %vm838, %v744, %v840
    %v843 = vsel %vm839, %v835, %v841
    %v844 = vpack.c.bf16 %v842, %v842
    %v845 = vpack.c.bf16 %v843, %v843
    %v846 = vld [vmem:[%s3] sm:$0xff]
    %v847 = vld [vmem:[%s3 + $0x8] sm:$0xff]
    %v848 = vld [vmem:[%s3 + $0x10] sm:$0xff]
    %v849 = vld [vmem:[%s3 + $0x18] sm:$0xff]
    %v850 = vld [vmem:[%s3 + $0x20] sm:$0xff]
    %v851 = vld [vmem:[%s3 + $0x28] sm:$0xff]
    %v852 = vld [vmem:[%s3 + $0x30] sm:$0xff]
    %v853 = vld [vmem:[%s3 + $0x38] sm:$0xff]
    %v854 = vld [vmem:[%s3 + $0x40] sm:$0xff]
    %v855 = vld [vmem:[%s3 + $0x48] sm:$0xff]
    %v856 = vld [vmem:[%s3 + $0x50] sm:$0xff]
    %v857 = vld [vmem:[%s3 + $0x58] sm:$0xff]
    %v858 = vld [vmem:[%s3 + $0x60] sm:$0xff]
    %v859 = vld [vmem:[%s3 + $0x68] sm:$0xff]
    %v860 = vld [vmem:[%s3 + $0x70] sm:$0xff]
    %v861 = vld [vmem:[%s3 + $0x78] sm:$0xff]
    %v862 = vld [vmem:[%s3 + $0x80] sm:$0xff]
    %v863 = vld [vmem:[%s3 + $0x88] sm:$0xff]
    %v864 = vld [vmem:[%s3 + $0x90] sm:$0xff]
    %v865 = vld [vmem:[%s3 + $0x98] sm:$0xff]
    %v866 = vld [vmem:[%s3 + $0xa0] sm:$0xff]
    %v867 = vld [vmem:[%s3 + $0xa8] sm:$0xff]
    %v868 = vld [vmem:[%s3 + $0xb0] sm:$0xff]
    %v869 = vld [vmem:[%s3 + $0xb8] sm:$0xff]
    %v870 = vld [vmem:[%s3 + $0xc0] sm:$0xff]
    %v871 = vld [vmem:[%s3 + $0xc8] sm:$0xff]
    %v872 = vld [vmem:[%s3 + $0xd0] sm:$0xff]
    %v873 = vld [vmem:[%s3 + $0xd8] sm:$0xff]
    %v874 = vld [vmem:[%s3 + $0xe0] sm:$0xff]
    %v875 = vld [vmem:[%s3 + $0xe8] sm:$0xff]
    %v876 = vld [vmem:[%s3 + $0xf0] sm:$0xff]
    %v877 = vld [vmem:[%s3 + $0xf8] sm:$0xff]
    %v878 = vld [vmem:[%s4] sm:$0x3]
    %v880 = vperm.slane %v878, 0
    %v881 = vperm.slane %v878, 1
    %v916 = vunpack.c.l.b16 %v846
    %v917 = vunpack.c.h.b16 %v846
    %v918 = vunpack.c.l.b16 %v847
    %v919 = vunpack.c.h.b16 %v847
    %v920 = vunpack.c.l.b16 %v848
    %v921 = vunpack.c.h.b16 %v848
    %v922 = vunpack.c.l.b16 %v849
    %v923 = vunpack.c.h.b16 %v849
    %v924 = vunpack.c.l.b16 %v850
    %v925 = vunpack.c.h.b16 %v850
    %v926 = vunpack.c.l.b16 %v851
    %v927 = vunpack.c.h.b16 %v851
    %v928 = vunpack.c.l.b16 %v852
    %v929 = vunpack.c.h.b16 %v852
    %v930 = vunpack.c.l.b16 %v853
    %v931 = vunpack.c.h.b16 %v853
    %v932 = vunpack.c.l.b16 %v854
    %v933 = vunpack.c.h.b16 %v854
    %v934 = vunpack.c.l.b16 %v855
    %v935 = vunpack.c.h.b16 %v855
    %v936 = vunpack.c.l.b16 %v856
    %v937 = vunpack.c.h.b16 %v856
    %v938 = vunpack.c.l.b16 %v857
    %v939 = vunpack.c.h.b16 %v857
    %v940 = vunpack.c.l.b16 %v858
    %v941 = vunpack.c.h.b16 %v858
    %v942 = vunpack.c.l.b16 %v859
    %v943 = vunpack.c.h.b16 %v859
    %v944 = vunpack.c.l.b16 %v860
    %v945 = vunpack.c.h.b16 %v860
    %v946 = vunpack.c.l.b16 %v861
    %v947 = vunpack.c.h.b16 %v861
    %v948 = vunpack.c.l.b16 %v862
    %v949 = vunpack.c.h.b16 %v862
    %v950 = vunpack.c.l.b16 %v863
    %v951 = vunpack.c.h.b16 %v863
    %v952 = vunpack.c.l.b16 %v864
    %v953 = vunpack.c.h.b16 %v864
    %v954 = vunpack.c.l.b16 %v865
    %v955 = vunpack.c.h.b16 %v865
    %v956 = vunpack.c.l.b16 %v866
    %v957 = vunpack.c.h.b16 %v866
    %v958 = vunpack.c.l.b16 %v867
    %v959 = vunpack.c.h.b16 %v867
    %v960 = vunpack.c.l.b16 %v868
    %v961 = vunpack.c.h.b16 %v868
    %v962 = vunpack.c.l.b16 %v869
    %v963 = vunpack.c.h.b16 %v869
    %v964 = vunpack.c.l.b16 %v870
    %v965 = vunpack.c.h.b16 %v870
    %v966 = vunpack.c.l.b16 %v871
    %v967 = vunpack.c.h.b16 %v871
    %v968 = vunpack.c.l.b16 %v872
    %v969 = vunpack.c.h.b16 %v872
    %v970 = vunpack.c.l.b16 %v873
    %v971 = vunpack.c.h.b16 %v873
    %v972 = vunpack.c.l.b16 %v874
    %v973 = vunpack.c.h.b16 %v874
    %v974 = vunpack.c.l.b16 %v875
    %v975 = vunpack.c.h.b16 %v875
    %v976 = vunpack.c.l.b16 %v876
    %v977 = vunpack.c.h.b16 %v876
    %v978 = vunpack.c.l.b16 %v877
    %v979 = vunpack.c.h.b16 %v877
    %v980 = vpack.c.b16 %v918, %v916
    %v981 = vpack.c.b16 %v919, %v917
    %v982 = vpack.c.b16 %v922, %v920
    %v983 = vpack.c.b16 %v923, %v921
    %v984 = vpack.c.b16 %v926, %v924
    %v985 = vpack.c.b16 %v927, %v925
    %v986 = vpack.c.b16 %v930, %v928
    %v987 = vpack.c.b16 %v931, %v929
    %v988 = vpack.c.b16 %v934, %v932
    %v989 = vpack.c.b16 %v935, %v933
    %v990 = vpack.c.b16 %v938, %v936
    %v991 = vpack.c.b16 %v939, %v937
    %v992 = vpack.c.b16 %v942, %v940
    %v993 = vpack.c.b16 %v943, %v941
    %v994 = vpack.c.b16 %v946, %v944
    %v995 = vpack.c.b16 %v947, %v945
    %v996 = vpack.c.b16 %v950, %v948
    %v997 = vpack.c.b16 %v951, %v949
    %v998 = vpack.c.b16 %v954, %v952
    %v999 = vpack.c.b16 %v955, %v953
    %v1000 = vpack.c.b16 %v958, %v956
    %v1001 = vpack.c.b16 %v959, %v957
    %v1002 = vpack.c.b16 %v962, %v960
    %v1003 = vpack.c.b16 %v963, %v961
    %v1004 = vpack.c.b16 %v966, %v964
    %v1005 = vpack.c.b16 %v967, %v965
    %v1006 = vpack.c.b16 %v970, %v968
    %v1007 = vpack.c.b16 %v971, %v969
    %v1008 = vpack.c.b16 %v974, %v972
    %v1009 = vpack.c.b16 %v975, %v973
    %v1010 = vpack.c.b16 %v978, %v976
    %v1011 = vpack.c.b16 %v979, %v977
    %1044 = vmatpush.bf16.msra.mxu0 %v994
    %1045 = vmatpush.bf16.msra.mxu0 %v992
    %1046 = vmatpush.bf16.msra.mxu0 %v990
    %1047 = vmatpush.bf16.msra.mxu0 %v988
    %1048 = vmatpush.bf16.msra.mxu0 %v986
    %1049 = vmatpush.bf16.msra.mxu0 %v984
    %1050 = vmatpush.bf16.msra.mxu0 %v982
    %1051 = vmatpush.bf16.msra.mxu0 %v980
    %1052 = vmatmul.bf16.gmra.mxu0 %v844
    %v1053 = vpop.f32.mrf.mxu0
    %v1054 = vadd.f32 %v880, %v1053
    %v1055 = vpop.f32.mrf.mxu0
    %1056 = vdwg.mxu0
    %1057 = vmatpush.bf16.msra.mxu0 %v1010
    %1058 = vmatpush.bf16.msra.mxu0 %v1008
    %1059 = vmatpush.bf16.msra.mxu0 %v1006
    %1060 = vmatpush.bf16.msra.mxu0 %v1004
    %1061 = vmatpush.bf16.msra.mxu0 %v1002
    %1062 = vmatpush.bf16.msra.mxu0 %v1000
    %1063 = vmatpush.bf16.msra.mxu0 %v998
    %1064 = vmatpush.bf16.msra.mxu0 %v996
    %1065 = vmatmul.bf16.gmra.mxu0 %v845
    %v1066 = vpop.f32.mrf.mxu0
    %v1067 = vadd.f32 %v1054, %v1066
    %v1068 = vpop.f32.mrf.mxu0
    %1069 = vdwg.mxu0
    %1070 = vmatpush.bf16.msra.mxu0 %v995
    %1071 = vmatpush.bf16.msra.mxu0 %v993
    %1072 = vmatpush.bf16.msra.mxu0 %v991
    %1073 = vmatpush.bf16.msra.mxu0 %v989
    %1074 = vmatpush.bf16.msra.mxu0 %v987
    %1075 = vmatpush.bf16.msra.mxu0 %v985
    %1076 = vmatpush.bf16.msra.mxu0 %v983
    %1077 = vmatpush.bf16.msra.mxu0 %v981
    %1078 = vmatmul.bf16.gmra.mxu0 %v844
    %v1079 = vpop.f32.mrf.mxu0
    %v1080 = vadd.f32 %v881, %v1079
    %v1081 = vpop.f32.mrf.mxu0
    %1082 = vdwg.mxu0
    %1083 = vmatpush.bf16.msra.mxu0 %v1011
    %1084 = vmatpush.bf16.msra.mxu0 %v1009
    %1085 = vmatpush.bf16.msra.mxu0 %v1007
    %1086 = vmatpush.bf16.msra.mxu0 %v1005
    %1087 = vmatpush.bf16.msra.mxu0 %v1003
    %1088 = vmatpush.bf16.msra.mxu0 %v1001
    %1089 = vmatpush.bf16.msra.mxu0 %v999
    %1090 = vmatpush.bf16.msra.mxu0 %v997
    %1091 = vmatmul.bf16.gmra.mxu0 %v845
    %v1092 = vpop.f32.mrf.mxu0
    %v1093 = vadd.f32 %v1080, %v1092
    %v1094 = vpop.f32.mrf.mxu0
    %1095 = vdwg.mxu0
    %vm1096 = vcmp.gt.f32.partialorder %v1067, 0.0
    %vm1097 = vcmp.gt.f32.partialorder %v1093, 0.0
    %v1098 = vmul.f32 %v1067, 0.2
    %v1099 = vmul.f32 %v1093, 0.2
    %v1100 = vsel %vm1096, %v1067, %v1098
    %v1101 = vsel %vm1097, %v1093, %v1099
    %v1102 = vld [vmem:[%s5] sm:$0x3]
    %v1103 = vpack.c.bf16 %v1100, %v1100
    %v1104 = vpack.c.bf16 %v1101, %v1101
    %v1105 = vld [vmem:[#allocation2] sm:$0x1]
    %1107 = vset.pattern.permute.xlu0 0
    %1108 = vperm.xlu0 %1107, %v1105
    %v1109 = vpop.permute.xlu0 %1108
    %v1111 = vperm.slane %v1109, 0
    %1113 = vst [vmem:[#allocation1] ss:$9 sm:$0xff] %v1102
    %v1114 = vld [vmem:[#allocation1] sm:$0xff]
    %v1115 = vld [vmem:[#allocation1 + $0x9] sm:$0xff]
    %1118 = vmatpush.bf16.xpose.msra.mxu0 0
    %1119 = vmatpush.bf16.xpose.msra.mxu0 0
    %1120 = vmatpush.bf16.xpose.msra.mxu0 0
    %1121 = vmatpush.bf16.xpose.msra.mxu0 0
    %1122 = vmatpush.bf16.xpose.msra.mxu0 0
    %1123 = vmatpush.bf16.xpose.msra.mxu0 0
    %1124 = vmatpush.bf16.xpose.msra.mxu0 0
    %1125 = vmatpush.bf16.xpose.msra.mxu0 %v1103
    %1126 = vmatmul.bf16.gmra.mxu0 %v1114
    %v1127 = vpop.f32.mrf.mxu0
    %v1128 = vadd.f32 %v1111, %v1127
    %v1129 = vpop.f32.mrf.mxu0
    %1130 = vdwg.mxu0
    %1131 = vmatpush.bf16.xpose.msra.mxu0 0
    %1132 = vmatpush.bf16.xpose.msra.mxu0 0
    %1133 = vmatpush.bf16.xpose.msra.mxu0 0
    %1134 = vmatpush.bf16.xpose.msra.mxu0 0
    %1135 = vmatpush.bf16.xpose.msra.mxu0 0
    %1136 = vmatpush.bf16.xpose.msra.mxu0 0
    %1137 = vmatpush.bf16.xpose.msra.mxu0 0
    %1138 = vmatpush.bf16.xpose.msra.mxu0 %v1104
    %1139 = vmatmul.bf16.gmra.mxu0 %v1115
    %v1140 = vpop.f32.mrf.mxu0
    %v1141 = vadd.f32 %v1128, %v1140
    %v1142 = vpop.f32.mrf.mxu0
    %1143 = vdwg.mxu0
    %v1144 = vand.u32 2147483647, %v1141
    %v1145 = vsub.f32 0.0, %v1144
    %v1146 = vmul.f32 %v1145, 1.442695
    %v1147 = vpow.pop %v1146
    %v1148 = vadd.f32 %v1147, 1.0
    %v1149 = vrcp.pop %v1148
    %v1150 = vmul.f32 %v1148, %v1149
    %v1151 = vsub.f32 1.0, %v1150
    %v1152 = vmul.f32 %v1149, %v1151
    %v1153 = vadd.f32 %v1149, %v1152
    %vm1154 = vweird.f32 %v1148
    %vm1155 = vweird.f32 %v1149
    %vm1156 = vmor %vm1154, %vm1155
    %v1157 = vsel %vm1156, %v1149, %v1153
    %v1158 = vand.u32 2147483647, %v1148
    %vm1159 = vcmp.eq.f32.partialorder %v1158, 8.507059e+37
    %v1160 = vand.u32 %v1148, 2147483648
    %v1161 = vor.u32 1.1754944e-38, %v1160
    %v1162 = vsel %vm1159, %v1161, %v1157
    %v1163 = vmul.f32 1.0, %v1162
    %vm1164 = vcmp.ge.f32.partialorder %v1141, 0.0
    %v1165 = vmul.f32 %v1147, %v1163
    %v1166 = vsel %vm1164, %v1163, %v1165
    %vm1167 = vcmask 57344
    %1168 = vst.msk [vmem:[#allocation3] sm:$0x1] %vm1167, %v1166
    // Predicated region
    $region30: #{discriminator_forward.1} parent=1 // pred_check
      _
    $region31: #{discriminator_forward.1} parent=1 // pred_check_branch
      %1170 = sbr.rel (0) target = $region33
    $region32: #{discriminator_forward.1} parent=1 // pred_region
      %1172 = vsyncadd [#allocation4], 0
      %s1174 = sshll.u32 [#allocation3], 4
      %s1175 = int_to_ptr.vmem [resolvable:$true] %s1174
      %s1176 = sshll.u32 %s7, 4
      %s1177 = int_to_ptr.hbm [resolvable:$true] %s1176
      %1179 = dma.vmem_to_hbm [thread:$0]  %s1175, 16, %s1177, [#allocation4]
    $region33: #{discriminator_forward.1} parent=1 // pred_fallthru
      _
    // Predicated region
    $region34: #{discriminator_forward.1} parent=1 // pred_check
      _
    $region35: #{discriminator_forward.1} parent=1 // pred_check_branch
      %1181 = sbr.rel (0) target = $region37
    $region36: #{discriminator_forward.1} parent=1 // pred_region
      %1183 = dma.done [#allocation4], 16
    $region37: #{discriminator_forward.1} parent=1 // pred_fallthru
      _
    %1184 = vsyncpa [#allocation4], 1

</llo_original>
